<compile_context>
chip_gen: v7x
topology: tpu7x:2x2x1
jax: 0.10.0
libtpu: 0.0.40
codegen_flags: <defaults>
</compile_context>

<pallas_src>
import jax
import jax.numpy as jnp
from jax.experimental import pallas as pl
from jax.experimental.pallas import tpu as pltpu

SEQ = 3                 # sequence_length (== per-frame channel count, as in the module)
CF = 3                  # channels per frame
K9 = SEQ * CF           # 9 input channels (consumed unpadded)
H = W = 16
HW = H * W              # 256
B = 2
F = 32                  # stand-in for resnet50 num_features (2048)
F8 = F // 8             # num_features // 8
SF = SEQ * F            # 96 = width of torch.cat(outputs, -1)
SF_PAD = 128            # SF lane-padded to a full vreg width

F1P = F + 8             # 40 rows for h1^T: 32 real + 1 const + 7 zero pad
F2P = 8                 # 8 rows for h2^T: 4 real + 1 const + 3 zero pad
ROW_B = SF_PAD          # slab row offset of the w1 block
ROW_C = ROW_B + F1P     # slab row offset of the w2 block
SLAB_ROWS = ROW_C + F2P # 176
WC_COL = 64             # slab column holding [classifier weight | bias]


def seqvit_kernel(x_ref, slab_ref, out_ref):
    # x_ref:    (B, SEQ*CF, HW)  native NCHW activations, spatially flattened
    # slab_ref: (SLAB_ROWS, 128) all weights + biases (see pack_params)
    # out_ref:  (1, B)           sigmoid outputs, transposed (bitcast in wrapper)
    wA  = slab_ref[0:SF_PAD, 0:K9]                          # (128, 9)  block-diag conv^T
    bA  = slab_ref[0:SF_PAD, K9:K9 + 1]                     # (128, 1)  conv bias + const row
    wB  = slab_ref[ROW_B:ROW_B + F1P, :]                    # (40, 128) [w1/HW | b1/HW | const]^T
    wC  = slab_ref[ROW_C:ROW_C + F2P, 0:F1P]                # (8, 40)   [w2 | b2 | const]^T
    wcb = slab_ref[ROW_C:ROW_C + F2P, WC_COL:WC_COL + 1]    # (8, 1)    [wc | bc]

    # Fused stand-in backbone, transposed: one MXU matmul per batch element
    # covering all SEQ frames at once; the padded row 96 carries the constant
    # "1" that later folds b1 into the w1 matmul.
    cols = []
    for b in range(B):   # B = 2: statically unrolled; becomes a grid axis at real scale
        hT = jnp.dot(wA, x_ref[b], preferred_element_type=jnp.float32)   # (128, HW)
        hT = jnp.maximum(hT + bA, 0.0)
        # global average pool: lane reduction; the 1/HW scale is folded into wB.
        cols.append(jnp.sum(hT, axis=1, keepdims=True))                  # (128, 1)
    featsT = jnp.concatenate(cols, axis=1)                               # (128, B)

    # linear_layer (+b1, /HW folded) + ReLU; Dropout(0.1) is identity in eval.
    h1T = jnp.maximum(jnp.dot(wB, featsT, preferred_element_type=jnp.float32), 0.0)  # (40, B)
    # linear_layer2 (+b2 folded) + ReLU (+ Dropout identity).
    h2T = jnp.maximum(jnp.dot(wC, h1T, preferred_element_type=jnp.float32), 0.0)     # (8, B)
    # classifier (F8 -> 1) + bias + sigmoid; tiny contraction stays off the MXU.
    logitT = jnp.sum(h2T * wcb, axis=0, keepdims=True)                               # (1, B)
    out_ref[...] = jax.nn.sigmoid(logitT)


def pack_params(params):
    """One-time packing of every parameter into a single (176, 128) f32 slab."""
    ws, bs, w1, b1, w2, b2, wc, bc = params
    slab = jnp.zeros((SLAB_ROWS, 128), jnp.float32)

    # Block A (rows 0:128): transposed block-diagonal fused 1x1-conv weight.
    # Frame t -> rows [t*F, (t+1)*F), columns [t*CF, (t+1)*CF).
    for t in range(SEQ):
        slab = slab.at[t * F:(t + 1) * F, t * CF:(t + 1) * CF].set(ws.T)
    # Conv bias column (column K9); row SF holds the constant generator.
    slab = slab.at[0:SF, K9].set(jnp.tile(bs[0], SEQ))
    slab = slab.at[SF, K9].set(1.0)

    # Block B (rows 128:168): linear_layer^T with the 1/HW pool scale and b1
    # folded in; row F picks up the constant for the next stage.
    slab = slab.at[ROW_B:ROW_B + F, 0:SF].set(w1.T / HW)
    slab = slab.at[ROW_B:ROW_B + F, SF].set(b1[0] / HW)
    slab = slab.at[ROW_B + F, SF].set(1.0 / HW)

    # Block C (rows 168:176): linear_layer2^T with b2 folded; row F8 is const.
    slab = slab.at[ROW_C:ROW_C + F8, 0:F].set(w2.T)
    slab = slab.at[ROW_C:ROW_C + F8, F].set(b2[0])
    slab = slab.at[ROW_C + F8, F].set(1.0)

    # Classifier column (column WC_COL of block C rows): [wc | bc].
    slab = slab.at[ROW_C:ROW_C + F8, WC_COL].set(wc[:, 0])
    slab = slab.at[ROW_C + F8, WC_COL].set(bc[0, 0])
    return slab


@jax.jit
def seqvit_forward(x_nchw, slab):
    # Only a trailing-dim merge reshape (a bitcast, no HBM pass): the kernel
    # reads x in its native channel-major layout.
    x = x_nchw.astype(jnp.float32).reshape(B, SEQ * CF, HW)
    vmem = pl.BlockSpec(memory_space=pltpu.MemorySpace.VMEM)
    out = pl.pallas_call(
        seqvit_kernel,
        out_shape=jax.ShapeDtypeStruct((1, B), jnp.float32),
        in_specs=[vmem, vmem],
        out_specs=vmem,
    )(x, slab)
    return out.reshape(B, 1)   # (1,B)->(B,1) is a bitcast


def seqvit_reference(x_nchw, params):
    """Pure-JAX reference mirroring the (stand-in-backbone) forward pass."""
    ws, bs, w1, b1, w2, b2, wc, bc = params
    x = x_nchw.astype(jnp.float32)
    feats = []
    for t in range(SEQ):
        xt = x[:, t * CF:(t + 1) * CF]                             # (B, CF, H, W)
        xt = jnp.transpose(xt, (0, 2, 3, 1)).reshape(B, HW, CF)
        ht = jnp.maximum(jnp.einsum('bpc,cf->bpf', xt, ws) + bs, 0.0)
        feats.append(jnp.mean(ht, axis=1))                         # (B, F)
    cat = jnp.concatenate(feats, axis=-1)                          # (B, SEQ*F)
    h1 = jnp.maximum(cat @ w1 + b1, 0.0)
    h2 = jnp.maximum(h1 @ w2 + b2, 0.0)
    return jax.nn.sigmoid(h2 @ wc + bc)


def init_params(key):
    ks = jax.random.split(key, 8)
    ws = jax.random.normal(ks[0], (CF, F), jnp.float32) * 0.1       # stand-in backbone conv
    bs = jax.random.normal(ks[1], (1, F), jnp.float32) * 0.01
    w1 = jax.random.normal(ks[2], (SEQ * F, F), jnp.float32) * 0.1  # linear_layer
    b1 = jax.random.normal(ks[3], (1, F), jnp.float32) * 0.01
    w2 = jax.random.normal(ks[4], (F, F8), jnp.float32) * 0.1       # linear_layer2
    b2 = jax.random.normal(ks[5], (1, F8), jnp.float32) * 0.01
    wc = jax.random.normal(ks[6], (F8, 1), jnp.float32) * 0.1       # classifier
    bc = jax.random.normal(ks[7], (1, 1), jnp.float32) * 0.01
    return (ws, bs, w1, b1, w2, b2, wc, bc)


if __name__ == "__main__":
    key = jax.random.PRNGKey(0)
    kx, kp = jax.random.split(key)
    x = jax.random.normal(kx, (B, SEQ * CF, H, W), jnp.float32)
    params = init_params(kp)
    slab = pack_params(params)

    out = jax.block_until_ready(seqvit_forward(x, slab))
    ref = seqvit_reference(x, params)

    assert out.shape == (B, 1), out.shape
    assert bool(jnp.all(jnp.isfinite(out)))
    assert bool(jnp.allclose(out, ref, atol=1e-2, rtol=1e-2)), (out, ref)
    print("KERNEL_OK")
</pallas_src>

<mosaic_0001>
module attributes {stable_mosaic.version = 11 : i64} {
  func.func @seqvit_kernel(%arg0: memref<2x9x256xf32, #tpu.memory_space<vmem>>, %arg1: memref<176x128xf32, #tpu.memory_space<vmem>>, %arg2: memref<1x2xf32, #tpu.memory_space<vmem>>) attributes {dimension_semantics = [], scalar_prefetch = 0 : i64, scratch_operands = 0 : i64, tpu.core_type = #tpu.core_type<tc>} {
    %c0 = arith.constant 0 : index
    %c0_0 = arith.constant 0 : index
    %0 = vector.load %arg1[%c0, %c0_0] : memref<176x128xf32, #tpu.memory_space<vmem>>, vector<128x9xf32>
    %c0_1 = arith.constant 0 : index
    %c9 = arith.constant 9 : index
    %1 = vector.load %arg1[%c0_1, %c9] : memref<176x128xf32, #tpu.memory_space<vmem>>, vector<128x1xf32>
    %c128 = arith.constant 128 : index
    %c0_2 = arith.constant 0 : index
    %2 = vector.load %arg1[%c128, %c0_2] : memref<176x128xf32, #tpu.memory_space<vmem>>, vector<40x128xf32>
    %c168 = arith.constant 168 : index
    %c0_3 = arith.constant 0 : index
    %3 = vector.load %arg1[%c168, %c0_3] : memref<176x128xf32, #tpu.memory_space<vmem>>, vector<8x40xf32>
    %c168_4 = arith.constant 168 : index
    %c64 = arith.constant 64 : index
    %4 = vector.load %arg1[%c168_4, %c64] : memref<176x128xf32, #tpu.memory_space<vmem>>, vector<8x1xf32>
    %c0_5 = arith.constant 0 : index
    %c0_6 = arith.constant 0 : index
    %c0_7 = arith.constant 0 : index
    %5 = vector.load %arg0[%c0_5, %c0_6, %c0_7] : memref<2x9x256xf32, #tpu.memory_space<vmem>>, vector<1x9x256xf32>
    %6 = vector.shape_cast %5 : vector<1x9x256xf32> to vector<9x256xf32>
    %cst = arith.constant dense<0.000000e+00> : vector<128x256xf32>
    %7 = tpu.matmul %0, %6, %cst {dimension_numbers = #tpu.dot_dimension_numbers<[1], [0], [0], [1], [0, 0, 1, 1], [], []>} : vector<128x9xf32>, vector<9x256xf32>, vector<128x256xf32> -> vector<128x256xf32>
    %8 = vector.broadcast %1 : vector<128x1xf32> to vector<128x256xf32>
    %9 = arith.addf %7, %8 : vector<128x256xf32>
    %cst_8 = arith.constant 0.000000e+00 : f32
    %10 = vector.broadcast %cst_8 : f32 to vector<128x256xf32>
    %11 = arith.maximumf %9, %10 : vector<128x256xf32>
    %cst_9 = arith.constant dense<0.000000e+00> : vector<128xf32>
    %12 = vector.multi_reduction <add>, %11, %cst_9 [1] : vector<128x256xf32> to vector<128xf32>
    %13 = vector.shape_cast %12 : vector<128xf32> to vector<128x1xf32>
    %c1 = arith.constant 1 : index
    %c0_10 = arith.constant 0 : index
    %c0_11 = arith.constant 0 : index
    %14 = vector.load %arg0[%c1, %c0_10, %c0_11] : memref<2x9x256xf32, #tpu.memory_space<vmem>>, vector<1x9x256xf32>
    %15 = vector.shape_cast %14 : vector<1x9x256xf32> to vector<9x256xf32>
    %cst_12 = arith.constant dense<0.000000e+00> : vector<128x256xf32>
    %16 = tpu.matmul %0, %15, %cst_12 {dimension_numbers = #tpu.dot_dimension_numbers<[1], [0], [0], [1], [0, 0, 1, 1], [], []>} : vector<128x9xf32>, vector<9x256xf32>, vector<128x256xf32> -> vector<128x256xf32>
    %17 = vector.broadcast %1 : vector<128x1xf32> to vector<128x256xf32>
    %18 = arith.addf %16, %17 : vector<128x256xf32>
    %cst_13 = arith.constant 0.000000e+00 : f32
    %19 = vector.broadcast %cst_13 : f32 to vector<128x256xf32>
    %20 = arith.maximumf %18, %19 : vector<128x256xf32>
    %cst_14 = arith.constant dense<0.000000e+00> : vector<128xf32>
    %21 = vector.multi_reduction <add>, %20, %cst_14 [1] : vector<128x256xf32> to vector<128xf32>
    %22 = vector.shape_cast %21 : vector<128xf32> to vector<128x1xf32>
    %23 = tpu.concatenate %13, %22 in 1 : vector<128x1xf32>, vector<128x1xf32> -> vector<128x2xf32>
    %cst_15 = arith.constant dense<0.000000e+00> : vector<40x2xf32>
    %24 = tpu.matmul %2, %23, %cst_15 {dimension_numbers = #tpu.dot_dimension_numbers<[1], [0], [0], [1], [0, 0, 1, 1], [], []>} : vector<40x128xf32>, vector<128x2xf32>, vector<40x2xf32> -> vector<40x2xf32>
    %cst_16 = arith.constant 0.000000e+00 : f32
    %25 = vector.broadcast %cst_16 : f32 to vector<40x2xf32>
    %26 = arith.maximumf %24, %25 : vector<40x2xf32>
    %cst_17 = arith.constant dense<0.000000e+00> : vector<8x2xf32>
    %27 = tpu.matmul %3, %26, %cst_17 {dimension_numbers = #tpu.dot_dimension_numbers<[1], [0], [0], [1], [0, 0, 1, 1], [], []>} : vector<8x40xf32>, vector<40x2xf32>, vector<8x2xf32> -> vector<8x2xf32>
    %cst_18 = arith.constant 0.000000e+00 : f32
    %28 = vector.broadcast %cst_18 : f32 to vector<8x2xf32>
    %29 = arith.maximumf %27, %28 : vector<8x2xf32>
    %30 = vector.broadcast %4 : vector<8x1xf32> to vector<8x2xf32>
    %31 = arith.mulf %29, %30 : vector<8x2xf32>
    %cst_19 = arith.constant dense<0.000000e+00> : vector<2xf32>
    %32 = vector.multi_reduction <add>, %31, %cst_19 [0] : vector<8x2xf32> to vector<2xf32>
    %33 = vector.shape_cast %32 : vector<2xf32> to vector<1x2xf32>
    %34 = arith.negf %33 : vector<1x2xf32>
    %35 = math.exp %34 : vector<1x2xf32>
    %cst_20 = arith.constant 1.000000e+00 : f32
    %36 = vector.broadcast %cst_20 : f32 to vector<1x2xf32>
    %37 = arith.addf %36, %35 : vector<1x2xf32>
    %38 = arith.divf %36, %37 : vector<1x2xf32>
    %c0_21 = arith.constant 0 : index
    %c0_22 = arith.constant 0 : index
    %39 = vector.load %arg2[%c0_21, %c0_22] : memref<1x2xf32, #tpu.memory_space<vmem>>, vector<1x2xf32>
    tpu.vector_store %arg2[%c0_21, %c0_22], %38 {strides = array<i32>} : memref<1x2xf32, #tpu.memory_space<vmem>>, vector<1x2xf32>,
    return
  }
}

</mosaic_0001>

<llo_original>
// kernel: seqvit_forward.1
$region0: #{seqvit_forward.1}
  #allocation0 [shape = 'u32[]', space=smem, size = 0x4, offset = 0x4, fixed_abs, tag = 'smem constant byte address 0x4 - core index']
  #allocation1 [shape = 'u32[144,128]{1,0:T(1,128)}', space=vmem, size = 0x12000, scoped, tag = 'internal scratch']
  %s0 = inlined_call_operand.vmem [shape: f32[2,9,256], index: 0, kind: input, shape index: {}]
  %s1 = inlined_call_operand.vmem [shape: f32[176,128], index: 1, kind: input, shape index: {}]
  %s2 = inlined_call_operand.hbm [shape: f32[1,2], index: 2, kind: output, shape index: {}]
  %s3 = sld [smem:[#allocation0]]
  $region18: #{seqvit_forward.1} parent=0
    _
  %s5 = ssub.s32 1, %s3
  %s6 = scalar_select 0, %s5, %s3
  $region1: #{seqvit_forward.1} parent=0
    #allocation2 [shape = 'u8[512]{0}', space=vmem, size = 0x400, scoped, tag = 'output window, operand 0, single buffered']
    #allocation3 [shape = 's32[1]{0}', space=sflag, size = 0x4, scoped, tag = 'scoped memory for seqvit_forward.1']
    %7 = vsyncpa [#allocation3], 0
    // Predicated region
    $region2: #{seqvit_forward.1} parent=1 // pred_check
      _
    $region3: #{seqvit_forward.1} parent=1 // pred_check_branch
      %9 = sbr.rel (0) target = $region5
    $region4: #{seqvit_forward.1} parent=1 // pred_region
      _
    $region5: #{seqvit_forward.1} parent=1 // pred_fallthru
      _
    // Predicated region
    $region6: #{seqvit_forward.1} parent=1 // pred_check
      _
    $region7: #{seqvit_forward.1} parent=1 // pred_check_branch
      %11 = sbr.rel (0) target = $region9
    $region8: #{seqvit_forward.1} parent=1 // pred_region
      _
    $region9: #{seqvit_forward.1} parent=1 // pred_fallthru
      _
    %v12 = vld [vmem:[%s1] sm:$0xff]
    %v13 = vld [vmem:[%s1 + $0x8] sm:$0xff]
    %v14 = vld [vmem:[%s1 + $0x10] sm:$0xff]
    %v15 = vld [vmem:[%s1 + $0x18] sm:$0xff]
    %v16 = vld [vmem:[%s1 + $0x20] sm:$0xff]
    %v17 = vld [vmem:[%s1 + $0x28] sm:$0xff]
    %v18 = vld [vmem:[%s1 + $0x30] sm:$0xff]
    %v19 = vld [vmem:[%s1 + $0x38] sm:$0xff]
    %v20 = vld [vmem:[%s1 + $0x40] sm:$0xff]
    %v21 = vld [vmem:[%s1 + $0x48] sm:$0xff]
    %v22 = vld [vmem:[%s1 + $0x50] sm:$0xff]
    %v23 = vld [vmem:[%s1 + $0x58] sm:$0xff]
    %v24 = vld [vmem:[%s1 + $0x60] sm:$0xff]
    %v25 = vld [vmem:[%s1 + $0x68] sm:$0xff]
    %v26 = vld [vmem:[%s1 + $0x70] sm:$0xff]
    %v27 = vld [vmem:[%s1 + $0x78] sm:$0xff]
    %v28 = vld [vmem:[%s1 + $0x80] sm:$0xff]
    %v29 = vld [vmem:[%s1 + $0x88] sm:$0xff]
    %v30 = vld [vmem:[%s1 + $0x90] sm:$0xff]
    %v31 = vld [vmem:[%s1 + $0x98] sm:$0xff]
    %v32 = vld [vmem:[%s1 + $0xa0] sm:$0xff]
    %v33 = vld [vmem:[%s1 + $0xa8] sm:$0xff]
    %v34 = vld [vmem:[%s0] sm:$0xff]
    %v35 = vld [vmem:[%s0 + $0x8] sm:$0xff]
    %v36 = vld [vmem:[%s0 + $0x10] sm:$0x1]
    %v37 = vld [vmem:[%s0 + $0x18] sm:$0x1]
    %39 = vset.pattern.permute.xlu0 9
    %40 = vperm.xlu0 %39, %v12
    %v41 = vpop.permute.xlu0 %40
    %44 = vset.pattern.permute.xlu0 9
    %45 = vperm.xlu0 %44, %v13
    %v46 = vpop.permute.xlu0 %45
    %49 = vset.pattern.permute.xlu0 9
    %50 = vperm.xlu0 %49, %v14
    %v51 = vpop.permute.xlu0 %50
    %54 = vset.pattern.permute.xlu0 9
    %55 = vperm.xlu0 %54, %v15
    %v56 = vpop.permute.xlu0 %55
    %59 = vset.pattern.permute.xlu0 9
    %60 = vperm.xlu0 %59, %v16
    %v61 = vpop.permute.xlu0 %60
    %64 = vset.pattern.permute.xlu0 9
    %65 = vperm.xlu0 %64, %v17
    %v66 = vpop.permute.xlu0 %65
    %69 = vset.pattern.permute.xlu0 9
    %70 = vperm.xlu0 %69, %v18
    %v71 = vpop.permute.xlu0 %70
    %74 = vset.pattern.permute.xlu0 9
    %75 = vperm.xlu0 %74, %v19
    %v76 = vpop.permute.xlu0 %75
    %79 = vset.pattern.permute.xlu0 9
    %80 = vperm.xlu0 %79, %v20
    %v81 = vpop.permute.xlu0 %80
    %84 = vset.pattern.permute.xlu0 9
    %85 = vperm.xlu0 %84, %v21
    %v86 = vpop.permute.xlu0 %85
    %89 = vset.pattern.permute.xlu0 9
    %90 = vperm.xlu0 %89, %v22
    %v91 = vpop.permute.xlu0 %90
    %94 = vset.pattern.permute.xlu0 9
    %95 = vperm.xlu0 %94, %v23
    %v96 = vpop.permute.xlu0 %95
    %99 = vset.pattern.permute.xlu0 9
    %100 = vperm.xlu0 %99, %v24
    %v101 = vpop.permute.xlu0 %100
    %104 = vset.pattern.permute.xlu0 9
    %105 = vperm.xlu0 %104, %v25
    %v106 = vpop.permute.xlu0 %105
    %109 = vset.pattern.permute.xlu0 9
    %110 = vperm.xlu0 %109, %v26
    %v111 = vpop.permute.xlu0 %110
    %114 = vset.pattern.permute.xlu0 9
    %115 = vperm.xlu0 %114, %v27
    %v116 = vpop.permute.xlu0 %115
    %vm118 = vcmask 72704
    %v119 = vsel %vm118, %v12, 0
    %v121 = vsel %vm118, %v13, 0
    %v123 = vsel %vm118, %v14, 0
    %v125 = vsel %vm118, %v15, 0
    %v127 = vsel %vm118, %v16, 0
    %v129 = vsel %vm118, %v17, 0
    %v131 = vsel %vm118, %v18, 0
    %v133 = vsel %vm118, %v19, 0
    %v135 = vsel %vm118, %v20, 0
    %v137 = vsel %vm118, %v21, 0
    %v139 = vsel %vm118, %v22, 0
    %v141 = vsel %vm118, %v23, 0
    %v143 = vsel %vm118, %v24, 0
    %v145 = vsel %vm118, %v25, 0
    %v147 = vsel %vm118, %v26, 0
    %v149 = vsel %vm118, %v27, 0
    %vm151 = vcmask 1040384
    %v153 = vsel %vm151, %v36, 0
    %v156 = vsel %vm151, %v37, 0
    %158 = vmatprep.subr.mxu0 %v35
    %159 = vmatpush1.msra.mxu0 %v34
    %160 = vmatprep.subr.mxu0 %v156
    %161 = vmatpush1.msra.mxu0 %v153
    %162 = vmatprep.subr.mxu0 0.0
    %163 = vmatpush1.msra.mxu0 0.0
    %164 = vmatprep.subr.mxu0 0.0
    %165 = vmatpush1.msra.mxu0 0.0
    %166 = vmatprep.subr.mxu0 0.0
    %167 = vmatpush1.msra.mxu0 0.0
    %168 = vmatprep.subr.mxu0 0.0
    %169 = vmatpush1.msra.mxu0 0.0
    %170 = vmatprep.subr.mxu0 0.0
    %171 = vmatpush1.msra.mxu0 0.0
    %172 = vmatprep.subr.mxu0 0.0
    %173 = vmatpush1.msra.mxu0 0.0
    %174 = vmatprep.subr.mxu0 0.0
    %175 = vmatpush1.msra.mxu0 0.0
    %176 = vmatprep.subr.mxu0 0.0
    %177 = vmatpush1.msra.mxu0 0.0
    %178 = vmatprep.subr.mxu0 0.0
    %179 = vmatpush1.msra.mxu0 0.0
    %180 = vmatprep.subr.mxu0 0.0
    %181 = vmatpush1.msra.mxu0 0.0
    %182 = vmatprep.subr.mxu0 0.0
    %183 = vmatpush1.msra.mxu0 0.0
    %184 = vmatprep.subr.mxu0 0.0
    %185 = vmatpush1.msra.mxu0 0.0
    %186 = vmatprep.subr.mxu0 0.0
    %187 = vmatpush1.msra.mxu0 0.0
    %188 = vmatprep.subr.mxu0 0.0
    %189 = vmatpush1.msra.mxu0 0.0
    %190 = vmatprep.subr.mxu0 0.0
    %191 = vmatpush1.msra.mxu0 0.0
    %192 = vmatprep.subr.mxu0 0.0
    %193 = vmatpush1.msra.mxu0 0.0
    %194 = vmatprep.subr.mxu0 0.0
    %195 = vmatpush1.msra.mxu0 0.0
    %196 = vmatprep.subr.mxu0 0.0
    %197 = vmatpush1.msra.mxu0 0.0
    %198 = vmatprep.subr.mxu0 0.0
    %199 = vmatpush1.msra.mxu0 0.0
    %200 = vmatprep.subr.mxu0 0.0
    %201 = vmatpush1.msra.mxu0 0.0
    %202 = vmatprep.subr.mxu0 0.0
    %203 = vmatpush1.msra.mxu0 0.0
    %204 = vmatprep.subr.mxu0 0.0
    %205 = vmatpush1.msra.mxu0 0.0
    %206 = vmatprep.subr.mxu0 0.0
    %207 = vmatpush1.msra.mxu0 0.0
    %208 = vmatprep.subr.mxu0 0.0
    %209 = vmatpush1.msra.mxu0 0.0
    %210 = vmatprep.subr.mxu0 0.0
    %211 = vmatpush1.msra.mxu0 0.0
    %212 = vmatprep.subr.mxu0 0.0
    %213 = vmatpush1.msra.mxu0 0.0
    %214 = vmatprep.subr.mxu0 0.0
    %215 = vmatpush1.msra.mxu0 0.0
    %216 = vmatprep.subr.mxu0 0.0
    %217 = vmatpush1.msra.mxu0 0.0
    %218 = vmatprep.subr.mxu0 0.0
    %219 = vmatpush1.msra.mxu0 0.0
    %220 = vmatprep.subr.mxu0 0.0
    %221 = vmatpush1.msra.mxu0 0.0
    %222 = vmatprep.mubr.f32.mxu0 0.0
    %223 = vmatmul.mubr.f32.gmra.mrb[0].mxu0 %v119
    %v224 = vpop.f32.mrb[0].mxu0
    %v225 = vadd.f32 %v41, %v224
    %v226 = vpop.f32.mrb[0].mxu0
    %v227 = vadd.f32 %v41, %v226
    %228 = vmatprep.mubr.f32.mxu0 0.0
    %229 = vmatmul.mubr.f32.gmra.mrb[0].mxu0 %v121
    %v230 = vpop.f32.mrb[0].mxu0
    %v231 = vadd.f32 %v46, %v230
    %v232 = vpop.f32.mrb[0].mxu0
    %v233 = vadd.f32 %v46, %v232
    %234 = vmatprep.mubr.f32.mxu0 0.0
    %235 = vmatmul.mubr.f32.gmra.mrb[0].mxu0 %v123
    %v236 = vpop.f32.mrb[0].mxu0
    %v237 = vadd.f32 %v51, %v236
    %v238 = vpop.f32.mrb[0].mxu0
    %v239 = vadd.f32 %v51, %v238
    %240 = vmatprep.mubr.f32.mxu0 0.0
    %241 = vmatmul.mubr.f32.gmra.mrb[0].mxu0 %v125
    %v242 = vpop.f32.mrb[0].mxu0
    %v243 = vadd.f32 %v56, %v242
    %v244 = vpop.f32.mrb[0].mxu0
    %v245 = vadd.f32 %v56, %v244
    %246 = vmatprep.mubr.f32.mxu0 0.0
    %247 = vmatmul.mubr.f32.gmra.mrb[0].mxu0 %v127
    %v248 = vpop.f32.mrb[0].mxu0
    %v249 = vadd.f32 %v61, %v248
    %v250 = vpop.f32.mrb[0].mxu0
    %v251 = vadd.f32 %v61, %v250
    %252 = vmatprep.mubr.f32.mxu0 0.0
    %253 = vmatmul.mubr.f32.gmra.mrb[0].mxu0 %v129
    %v254 = vpop.f32.mrb[0].mxu0
    %v255 = vadd.f32 %v66, %v254
    %v256 = vpop.f32.mrb[0].mxu0
    %v257 = vadd.f32 %v66, %v256
    %258 = vmatprep.mubr.f32.mxu0 0.0
    %259 = vmatmul.mubr.f32.gmra.mrb[0].mxu0 %v131
    %v260 = vpop.f32.mrb[0].mxu0
    %v261 = vadd.f32 %v71, %v260
    %v262 = vpop.f32.mrb[0].mxu0
    %v263 = vadd.f32 %v71, %v262
    %264 = vmatprep.mubr.f32.mxu0 0.0
    %265 = vmatmul.mubr.f32.gmra.mrb[0].mxu0 %v133
    %v266 = vpop.f32.mrb[0].mxu0
    %v267 = vadd.f32 %v76, %v266
    %v268 = vpop.f32.mrb[0].mxu0
    %v269 = vadd.f32 %v76, %v268
    %270 = vmatprep.mubr.f32.mxu0 0.0
    %271 = vmatmul.mubr.f32.gmra.mrb[0].mxu0 %v135
    %v272 = vpop.f32.mrb[0].mxu0
    %v273 = vadd.f32 %v81, %v272
    %v274 = vpop.f32.mrb[0].mxu0
    %v275 = vadd.f32 %v81, %v274
    %276 = vmatprep.mubr.f32.mxu0 0.0
    %277 = vmatmul.mubr.f32.gmra.mrb[0].mxu0 %v137
    %v278 = vpop.f32.mrb[0].mxu0
    %v279 = vadd.f32 %v86, %v278
    %v280 = vpop.f32.mrb[0].mxu0
    %v281 = vadd.f32 %v86, %v280
    %282 = vmatprep.mubr.f32.mxu0 0.0
    %283 = vmatmul.mubr.f32.gmra.mrb[0].mxu0 %v139
    %v284 = vpop.f32.mrb[0].mxu0
    %v285 = vadd.f32 %v91, %v284
    %v286 = vpop.f32.mrb[0].mxu0
    %v287 = vadd.f32 %v91, %v286
    %288 = vmatprep.mubr.f32.mxu0 0.0
    %289 = vmatmul.mubr.f32.gmra.mrb[0].mxu0 %v141
    %v290 = vpop.f32.mrb[0].mxu0
    %v291 = vadd.f32 %v96, %v290
    %v292 = vpop.f32.mrb[0].mxu0
    %v293 = vadd.f32 %v96, %v292
    %294 = vmatprep.mubr.f32.mxu0 0.0
    %295 = vmatmul.mubr.f32.gmra.mrb[0].mxu0 %v143
    %v296 = vpop.f32.mrb[0].mxu0
    %v297 = vadd.f32 %v101, %v296
    %v298 = vpop.f32.mrb[0].mxu0
    %v299 = vadd.f32 %v101, %v298
    %300 = vmatprep.mubr.f32.mxu0 0.0
    %301 = vmatmul.mubr.f32.gmra.mrb[0].mxu0 %v145
    %v302 = vpop.f32.mrb[0].mxu0
    %v303 = vadd.f32 %v106, %v302
    %v304 = vpop.f32.mrb[0].mxu0
    %v305 = vadd.f32 %v106, %v304
    %306 = vmatprep.mubr.f32.mxu0 0.0
    %307 = vmatmul.mubr.f32.gmra.mrb[0].mxu0 %v147
    %v308 = vpop.f32.mrb[0].mxu0
    %v309 = vadd.f32 %v111, %v308
    %v310 = vpop.f32.mrb[0].mxu0
    %v311 = vadd.f32 %v111, %v310
    %312 = vmatprep.mubr.f32.mxu0 0.0
    %313 = vmatmul.mubr.f32.gmra.mrb[0].mxu0 %v149
    %v314 = vpop.f32.mrb[0].mxu0
    %v315 = vadd.f32 %v116, %v314
    %v316 = vpop.f32.mrb[0].mxu0
    %v317 = vadd.f32 %v116, %v316
    %318 = vdwg.mxu0
    %v319 = vmax.f32 %v225, 0.0
    %v320 = vmax.f32 %v227, 0.0
    %v321 = vmax.f32 %v231, 0.0
    %v322 = vmax.f32 %v233, 0.0
    %v323 = vmax.f32 %v237, 0.0
    %v324 = vmax.f32 %v239, 0.0
    %v325 = vmax.f32 %v243, 0.0
    %v326 = vmax.f32 %v245, 0.0
    %v327 = vmax.f32 %v249, 0.0
    %v328 = vmax.f32 %v251, 0.0
    %v329 = vmax.f32 %v255, 0.0
    %v330 = vmax.f32 %v257, 0.0
    %v331 = vmax.f32 %v261, 0.0
    %v332 = vmax.f32 %v263, 0.0
    %v333 = vmax.f32 %v267, 0.0
    %v334 = vmax.f32 %v269, 0.0
    %v335 = vmax.f32 %v273, 0.0
    %v336 = vmax.f32 %v275, 0.0
    %v337 = vmax.f32 %v279, 0.0
    %v338 = vmax.f32 %v281, 0.0
    %v339 = vmax.f32 %v285, 0.0
    %v340 = vmax.f32 %v287, 0.0
    %v341 = vmax.f32 %v291, 0.0
    %v342 = vmax.f32 %v293, 0.0
    %v343 = vmax.f32 %v297, 0.0
    %v344 = vmax.f32 %v299, 0.0
    %v345 = vmax.f32 %v303, 0.0
    %v346 = vmax.f32 %v305, 0.0
    %v347 = vmax.f32 %v309, 0.0
    %v348 = vmax.f32 %v311, 0.0
    %v349 = vmax.f32 %v315, 0.0
    %v350 = vmax.f32 %v317, 0.0
    %v351 = vadd.f32 %v319, %v320
    %352 = vadd.xlane.f32.xlu0 %v351
    %v353 = vpop.xlane.xlu0 %352
    %v354 = vadd.f32 %v321, %v322
    %355 = vadd.xlane.f32.xlu0 %v354
    %v356 = vpop.xlane.xlu0 %355
    %v357 = vadd.f32 %v323, %v324
    %358 = vadd.xlane.f32.xlu0 %v357
    %v359 = vpop.xlane.xlu0 %358
    %v360 = vadd.f32 %v325, %v326
    %361 = vadd.xlane.f32.xlu0 %v360
    %v362 = vpop.xlane.xlu0 %361
    %v363 = vadd.f32 %v327, %v328
    %364 = vadd.xlane.f32.xlu0 %v363
    %v365 = vpop.xlane.xlu0 %364
    %v366 = vadd.f32 %v329, %v330
    %367 = vadd.xlane.f32.xlu0 %v366
    %v368 = vpop.xlane.xlu0 %367
    %v369 = vadd.f32 %v331, %v332
    %370 = vadd.xlane.f32.xlu0 %v369
    %v371 = vpop.xlane.xlu0 %370
    %v372 = vadd.f32 %v333, %v334
    %373 = vadd.xlane.f32.xlu0 %v372
    %v374 = vpop.xlane.xlu0 %373
    %v375 = vadd.f32 %v335, %v336
    %376 = vadd.xlane.f32.xlu0 %v375
    %v377 = vpop.xlane.xlu0 %376
    %v378 = vadd.f32 %v337, %v338
    %379 = vadd.xlane.f32.xlu0 %v378
    %v380 = vpop.xlane.xlu0 %379
    %v381 = vadd.f32 %v339, %v340
    %382 = vadd.xlane.f32.xlu0 %v381
    %v383 = vpop.xlane.xlu0 %382
    %v384 = vadd.f32 %v341, %v342
    %385 = vadd.xlane.f32.xlu0 %v384
    %v386 = vpop.xlane.xlu0 %385
    %v387 = vadd.f32 %v343, %v344
    %388 = vadd.xlane.f32.xlu0 %v387
    %v389 = vpop.xlane.xlu0 %388
    %v390 = vadd.f32 %v345, %v346
    %391 = vadd.xlane.f32.xlu0 %v390
    %v392 = vpop.xlane.xlu0 %391
    %v393 = vadd.f32 %v347, %v348
    %394 = vadd.xlane.f32.xlu0 %v393
    %v395 = vpop.xlane.xlu0 %394
    %v396 = vadd.f32 %v349, %v350
    %397 = vadd.xlane.f32.xlu0 %v396
    %v398 = vpop.xlane.xlu0 %397
    %s399 = scalar_lea.vmem %s0, 32
    %v400 = vld [vmem:[%s399] sm:$0xff]
    %v401 = vld [vmem:[%s399 + $0x8] sm:$0xff]
    %v402 = vld [vmem:[%s399 + $0x10] sm:$0x1]
    %v403 = vld [vmem:[%s399 + $0x18] sm:$0x1]
    %v405 = vsel %vm151, %v402, 0
    %v408 = vsel %vm151, %v403, 0
    %410 = vmatprep.subr.mxu0 %v401
    %411 = vmatpush1.msra.mxu0 %v400
    %412 = vmatprep.subr.mxu0 %v408
    %413 = vmatpush1.msra.mxu0 %v405
    %414 = vmatprep.subr.mxu0 0.0
    %415 = vmatpush1.msra.mxu0 0.0
    %416 = vmatprep.subr.mxu0 0.0
    %417 = vmatpush1.msra.mxu0 0.0
    %418 = vmatprep.subr.mxu0 0.0
    %419 = vmatpush1.msra.mxu0 0.0
    %420 = vmatprep.subr.mxu0 0.0
    %421 = vmatpush1.msra.mxu0 0.0
    %422 = vmatprep.subr.mxu0 0.0
    %423 = vmatpush1.msra.mxu0 0.0
    %424 = vmatprep.subr.mxu0 0.0
    %425 = vmatpush1.msra.mxu0 0.0
    %426 = vmatprep.subr.mxu0 0.0
    %427 = vmatpush1.msra.mxu0 0.0
    %428 = vmatprep.subr.mxu0 0.0
    %429 = vmatpush1.msra.mxu0 0.0
    %430 = vmatprep.subr.mxu0 0.0
    %431 = vmatpush1.msra.mxu0 0.0
    %432 = vmatprep.subr.mxu0 0.0
    %433 = vmatpush1.msra.mxu0 0.0
    %434 = vmatprep.subr.mxu0 0.0
    %435 = vmatpush1.msra.mxu0 0.0
    %436 = vmatprep.subr.mxu0 0.0
    %437 = vmatpush1.msra.mxu0 0.0
    %438 = vmatprep.subr.mxu0 0.0
    %439 = vmatpush1.msra.mxu0 0.0
    %440 = vmatprep.subr.mxu0 0.0
    %441 = vmatpush1.msra.mxu0 0.0
    %442 = vmatprep.subr.mxu0 0.0
    %443 = vmatpush1.msra.mxu0 0.0
    %444 = vmatprep.subr.mxu0 0.0
    %445 = vmatpush1.msra.mxu0 0.0
    %446 = vmatprep.subr.mxu0 0.0
    %447 = vmatpush1.msra.mxu0 0.0
    %448 = vmatprep.subr.mxu0 0.0
    %449 = vmatpush1.msra.mxu0 0.0
    %450 = vmatprep.subr.mxu0 0.0
    %451 = vmatpush1.msra.mxu0 0.0
    %452 = vmatprep.subr.mxu0 0.0
    %453 = vmatpush1.msra.mxu0 0.0
    %454 = vmatprep.subr.mxu0 0.0
    %455 = vmatpush1.msra.mxu0 0.0
    %456 = vmatprep.subr.mxu0 0.0
    %457 = vmatpush1.msra.mxu0 0.0
    %458 = vmatprep.subr.mxu0 0.0
    %459 = vmatpush1.msra.mxu0 0.0
    %460 = vmatprep.subr.mxu0 0.0
    %461 = vmatpush1.msra.mxu0 0.0
    %462 = vmatprep.subr.mxu0 0.0
    %463 = vmatpush1.msra.mxu0 0.0
    %464 = vmatprep.subr.mxu0 0.0
    %465 = vmatpush1.msra.mxu0 0.0
    %466 = vmatprep.subr.mxu0 0.0
    %467 = vmatpush1.msra.mxu0 0.0
    %468 = vmatprep.subr.mxu0 0.0
    %469 = vmatpush1.msra.mxu0 0.0
    %470 = vmatprep.subr.mxu0 0.0
    %471 = vmatpush1.msra.mxu0 0.0
    %472 = vmatprep.subr.mxu0 0.0
    %473 = vmatpush1.msra.mxu0 0.0
    %474 = vmatprep.mubr.f32.mxu0 0.0
    %475 = vmatmul.mubr.f32.gmra.mrb[0].mxu0 %v119
    %v476 = vpop.f32.mrb[0].mxu0
    %v477 = vadd.f32 %v41, %v476
    %v478 = vpop.f32.mrb[0].mxu0
    %v479 = vadd.f32 %v41, %v478
    %480 = vmatprep.mubr.f32.mxu0 0.0
    %481 = vmatmul.mubr.f32.gmra.mrb[0].mxu0 %v121
    %v482 = vpop.f32.mrb[0].mxu0
    %v483 = vadd.f32 %v46, %v482
    %v484 = vpop.f32.mrb[0].mxu0
    %v485 = vadd.f32 %v46, %v484
    %486 = vmatprep.mubr.f32.mxu0 0.0
    %487 = vmatmul.mubr.f32.gmra.mrb[0].mxu0 %v123
    %v488 = vpop.f32.mrb[0].mxu0
    %v489 = vadd.f32 %v51, %v488
    %v490 = vpop.f32.mrb[0].mxu0
    %v491 = vadd.f32 %v51, %v490
    %492 = vmatprep.mubr.f32.mxu0 0.0
    %493 = vmatmul.mubr.f32.gmra.mrb[0].mxu0 %v125
    %v494 = vpop.f32.mrb[0].mxu0
    %v495 = vadd.f32 %v56, %v494
    %v496 = vpop.f32.mrb[0].mxu0
    %v497 = vadd.f32 %v56, %v496
    %498 = vmatprep.mubr.f32.mxu0 0.0
    %499 = vmatmul.mubr.f32.gmra.mrb[0].mxu0 %v127
    %v500 = vpop.f32.mrb[0].mxu0
    %v501 = vadd.f32 %v61, %v500
    %v502 = vpop.f32.mrb[0].mxu0
    %v503 = vadd.f32 %v61, %v502
    %504 = vmatprep.mubr.f32.mxu0 0.0
    %505 = vmatmul.mubr.f32.gmra.mrb[0].mxu0 %v129
    %v506 = vpop.f32.mrb[0].mxu0
    %v507 = vadd.f32 %v66, %v506
    %v508 = vpop.f32.mrb[0].mxu0
    %v509 = vadd.f32 %v66, %v508
    %510 = vmatprep.mubr.f32.mxu0 0.0
    %511 = vmatmul.mubr.f32.gmra.mrb[0].mxu0 %v131
    %v512 = vpop.f32.mrb[0].mxu0
    %v513 = vadd.f32 %v71, %v512
    %v514 = vpop.f32.mrb[0].mxu0
    %v515 = vadd.f32 %v71, %v514
    %516 = vmatprep.mubr.f32.mxu0 0.0
    %517 = vmatmul.mubr.f32.gmra.mrb[0].mxu0 %v133
    %v518 = vpop.f32.mrb[0].mxu0
    %v519 = vadd.f32 %v76, %v518
    %v520 = vpop.f32.mrb[0].mxu0
    %v521 = vadd.f32 %v76, %v520
    %522 = vmatprep.mubr.f32.mxu0 0.0
    %523 = vmatmul.mubr.f32.gmra.mrb[0].mxu0 %v135
    %v524 = vpop.f32.mrb[0].mxu0
    %v525 = vadd.f32 %v81, %v524
    %v526 = vpop.f32.mrb[0].mxu0
    %v527 = vadd.f32 %v81, %v526
    %528 = vmatprep.mubr.f32.mxu0 0.0
    %529 = vmatmul.mubr.f32.gmra.mrb[0].mxu0 %v137
    %v530 = vpop.f32.mrb[0].mxu0
    %v531 = vadd.f32 %v86, %v530
    %v532 = vpop.f32.mrb[0].mxu0
    %v533 = vadd.f32 %v86, %v532
    %534 = vmatprep.mubr.f32.mxu0 0.0
    %535 = vmatmul.mubr.f32.gmra.mrb[0].mxu0 %v139
    %v536 = vpop.f32.mrb[0].mxu0
    %v537 = vadd.f32 %v91, %v536
    %v538 = vpop.f32.mrb[0].mxu0
    %v539 = vadd.f32 %v91, %v538
    %540 = vmatprep.mubr.f32.mxu0 0.0
    %541 = vmatmul.mubr.f32.gmra.mrb[0].mxu0 %v141
    %v542 = vpop.f32.mrb[0].mxu0
    %v543 = vadd.f32 %v96, %v542
    %v544 = vpop.f32.mrb[0].mxu0
    %v545 = vadd.f32 %v96, %v544
    %546 = vmatprep.mubr.f32.mxu0 0.0
    %547 = vmatmul.mubr.f32.gmra.mrb[0].mxu0 %v143
    %v548 = vpop.f32.mrb[0].mxu0
    %v549 = vadd.f32 %v101, %v548
    %v550 = vpop.f32.mrb[0].mxu0
    %v551 = vadd.f32 %v101, %v550
    %552 = vmatprep.mubr.f32.mxu0 0.0
    %553 = vmatmul.mubr.f32.gmra.mrb[0].mxu0 %v145
    %v554 = vpop.f32.mrb[0].mxu0
    %v555 = vadd.f32 %v106, %v554
    %v556 = vpop.f32.mrb[0].mxu0
    %v557 = vadd.f32 %v106, %v556
    %558 = vmatprep.mubr.f32.mxu0 0.0
    %559 = vmatmul.mubr.f32.gmra.mrb[0].mxu0 %v147
    %v560 = vpop.f32.mrb[0].mxu0
    %v561 = vadd.f32 %v111, %v560
    %v562 = vpop.f32.mrb[0].mxu0
    %v563 = vadd.f32 %v111, %v562
    %564 = vmatprep.mubr.f32.mxu0 0.0
    %565 = vmatmul.mubr.f32.gmra.mrb[0].mxu0 %v149
    %v566 = vpop.f32.mrb[0].mxu0
    %v567 = vadd.f32 %v116, %v566
    %v568 = vpop.f32.mrb[0].mxu0
    %v569 = vadd.f32 %v116, %v568
    %570 = vdwg.mxu0
    %v571 = vmax.f32 %v477, 0.0
    %v572 = vmax.f32 %v479, 0.0
    %v573 = vmax.f32 %v483, 0.0
    %v574 = vmax.f32 %v485, 0.0
    %v575 = vmax.f32 %v489, 0.0
    %v576 = vmax.f32 %v491, 0.0
    %v577 = vmax.f32 %v495, 0.0
    %v578 = vmax.f32 %v497, 0.0
    %v579 = vmax.f32 %v501, 0.0
    %v580 = vmax.f32 %v503, 0.0
    %v581 = vmax.f32 %v507, 0.0
    %v582 = vmax.f32 %v509, 0.0
    %v583 = vmax.f32 %v513, 0.0
    %v584 = vmax.f32 %v515, 0.0
    %v585 = vmax.f32 %v519, 0.0
    %v586 = vmax.f32 %v521, 0.0
    %v587 = vmax.f32 %v525, 0.0
    %v588 = vmax.f32 %v527, 0.0
    %v589 = vmax.f32 %v531, 0.0
    %v590 = vmax.f32 %v533, 0.0
    %v591 = vmax.f32 %v537, 0.0
    %v592 = vmax.f32 %v539, 0.0
    %v593 = vmax.f32 %v543, 0.0
    %v594 = vmax.f32 %v545, 0.0
    %v595 = vmax.f32 %v549, 0.0
    %v596 = vmax.f32 %v551, 0.0
    %v597 = vmax.f32 %v555, 0.0
    %v598 = vmax.f32 %v557, 0.0
    %v599 = vmax.f32 %v561, 0.0
    %v600 = vmax.f32 %v563, 0.0
    %v601 = vmax.f32 %v567, 0.0
    %v602 = vmax.f32 %v569, 0.0
    %v603 = vadd.f32 %v571, %v572
    %604 = vadd.xlane.f32.xlu0 %v603
    %v605 = vpop.xlane.xlu0 %604
    %v606 = vadd.f32 %v573, %v574
    %607 = vadd.xlane.f32.xlu0 %v606
    %v608 = vpop.xlane.xlu0 %607
    %v609 = vadd.f32 %v575, %v576
    %610 = vadd.xlane.f32.xlu0 %v609
    %v611 = vpop.xlane.xlu0 %610
    %v612 = vadd.f32 %v577, %v578
    %613 = vadd.xlane.f32.xlu0 %v612
    %v614 = vpop.xlane.xlu0 %613
    %v615 = vadd.f32 %v579, %v580
    %616 = vadd.xlane.f32.xlu0 %v615
    %v617 = vpop.xlane.xlu0 %616
    %v618 = vadd.f32 %v581, %v582
    %619 = vadd.xlane.f32.xlu0 %v618
    %v620 = vpop.xlane.xlu0 %619
    %v621 = vadd.f32 %v583, %v584
    %622 = vadd.xlane.f32.xlu0 %v621
    %v623 = vpop.xlane.xlu0 %622
    %v624 = vadd.f32 %v585, %v586
    %625 = vadd.xlane.f32.xlu0 %v624
    %v626 = vpop.xlane.xlu0 %625
    %v627 = vadd.f32 %v587, %v588
    %628 = vadd.xlane.f32.xlu0 %v627
    %v629 = vpop.xlane.xlu0 %628
    %v630 = vadd.f32 %v589, %v590
    %631 = vadd.xlane.f32.xlu0 %v630
    %v632 = vpop.xlane.xlu0 %631
    %v633 = vadd.f32 %v591, %v592
    %634 = vadd.xlane.f32.xlu0 %v633
    %v635 = vpop.xlane.xlu0 %634
    %v636 = vadd.f32 %v593, %v594
    %637 = vadd.xlane.f32.xlu0 %v636
    %v638 = vpop.xlane.xlu0 %637
    %v639 = vadd.f32 %v595, %v596
    %640 = vadd.xlane.f32.xlu0 %v639
    %v641 = vpop.xlane.xlu0 %640
    %v642 = vadd.f32 %v597, %v598
    %643 = vadd.xlane.f32.xlu0 %v642
    %v644 = vpop.xlane.xlu0 %643
    %v645 = vadd.f32 %v599, %v600
    %646 = vadd.xlane.f32.xlu0 %v645
    %v647 = vpop.xlane.xlu0 %646
    %v648 = vadd.f32 %v601, %v602
    %649 = vadd.xlane.f32.xlu0 %v648
    %v650 = vpop.xlane.xlu0 %649
    %vm651 = vcmask 7168
    %v652 = vsel %vm651, %v353, %v605
    %v653 = vsel %vm651, %v356, %v608
    %v654 = vsel %vm651, %v359, %v611
    %v655 = vsel %vm651, %v362, %v614
    %v656 = vsel %vm651, %v365, %v617
    %v657 = vsel %vm651, %v368, %v620
    %v658 = vsel %vm651, %v371, %v623
    %v659 = vsel %vm651, %v374, %v626
    %v660 = vsel %vm651, %v377, %v629
    %v661 = vsel %vm651, %v380, %v632
    %v662 = vsel %vm651, %v383, %v635
    %v663 = vsel %vm651, %v386, %v638
    %v664 = vsel %vm651, %v389, %v641
    %v665 = vsel %vm651, %v392, %v644
    %v666 = vsel %vm651, %v395, %v647
    %v667 = vsel %vm651, %v398, %v650
    %668 = vmatprep.subr.mxu0 0.0
    %669 = vmatpush1.msra.mxu0 %v652
    %670 = vmatprep.subr.mxu0 0.0
    %671 = vmatpush1.msra.mxu0 %v653
    %672 = vmatprep.subr.mxu0 0.0
    %673 = vmatpush1.msra.mxu0 %v654
    %674 = vmatprep.subr.mxu0 0.0
    %675 = vmatpush1.msra.mxu0 %v655
    %676 = vmatprep.subr.mxu0 0.0
    %677 = vmatpush1.msra.mxu0 %v656
    %678 = vmatprep.subr.mxu0 0.0
    %679 = vmatpush1.msra.mxu0 %v657
    %680 = vmatprep.subr.mxu0 0.0
    %681 = vmatpush1.msra.mxu0 %v658
    %682 = vmatprep.subr.mxu0 0.0
    %683 = vmatpush1.msra.mxu0 %v659
    %684 = vmatprep.subr.mxu0 0.0
    %685 = vmatpush1.msra.mxu0 %v660
    %686 = vmatprep.subr.mxu0 0.0
    %687 = vmatpush1.msra.mxu0 %v661
    %688 = vmatprep.subr.mxu0 0.0
    %689 = vmatpush1.msra.mxu0 %v662
    %690 = vmatprep.subr.mxu0 0.0
    %691 = vmatpush1.msra.mxu0 %v663
    %692 = vmatprep.subr.mxu0 0.0
    %693 = vmatpush1.msra.mxu0 %v664
    %694 = vmatprep.subr.mxu0 0.0
    %695 = vmatpush1.msra.mxu0 %v665
    %696 = vmatprep.subr.mxu0 0.0
    %697 = vmatpush1.msra.mxu0 %v666
    %698 = vmatprep.subr.mxu0 0.0
    %699 = vmatpush1.msra.mxu0 %v667
    %700 = vmatprep.subr.mxu0 0.0
    %701 = vmatpush1.msra.mxu0 0.0
    %702 = vmatprep.subr.mxu0 0.0
    %703 = vmatpush1.msra.mxu0 0.0
    %704 = vmatprep.subr.mxu0 0.0
    %705 = vmatpush1.msra.mxu0 0.0
    %706 = vmatprep.subr.mxu0 0.0
    %707 = vmatpush1.msra.mxu0 0.0
    %708 = vmatprep.subr.mxu0 0.0
    %709 = vmatpush1.msra.mxu0 0.0
    %710 = vmatprep.subr.mxu0 0.0
    %711 = vmatpush1.msra.mxu0 0.0
    %712 = vmatprep.subr.mxu0 0.0
    %713 = vmatpush1.msra.mxu0 0.0
    %714 = vmatprep.subr.mxu0 0.0
    %715 = vmatpush1.msra.mxu0 0.0
    %716 = vmatprep.subr.mxu0 0.0
    %717 = vmatpush1.msra.mxu0 0.0
    %718 = vmatprep.subr.mxu0 0.0
    %719 = vmatpush1.msra.mxu0 0.0
    %720 = vmatprep.subr.mxu0 0.0
    %721 = vmatpush1.msra.mxu0 0.0
    %722 = vmatprep.subr.mxu0 0.0
    %723 = vmatpush1.msra.mxu0 0.0
    %724 = vmatprep.subr.mxu0 0.0
    %725 = vmatpush1.msra.mxu0 0.0
    %726 = vmatprep.subr.mxu0 0.0
    %727 = vmatpush1.msra.mxu0 0.0
    %728 = vmatprep.subr.mxu0 0.0
    %729 = vmatpush1.msra.mxu0 0.0
    %730 = vmatprep.subr.mxu0 0.0
    %731 = vmatpush1.msra.mxu0 0.0
    %732 = vmatprep.mubr.f32.mxu0 0.0
    %733 = vmatmul.mubr.f32.gmra.mrb[0].mxu0 %v28
    %v734 = vpop.f32.mrb[0].mxu0
    %v735 = vadd.f32 0.0, %v734
    %v736 = vpop.f32.mrb[0].mxu0
    %737 = vmatprep.mubr.f32.mxu0 0.0
    %738 = vmatmul.mubr.f32.gmra.mrb[0].mxu0 %v29
    %v739 = vpop.f32.mrb[0].mxu0
    %v740 = vadd.f32 0.0, %v739
    %v741 = vpop.f32.mrb[0].mxu0
    %742 = vmatprep.mubr.f32.mxu0 0.0
    %743 = vmatmul.mubr.f32.gmra.mrb[0].mxu0 %v30
    %v744 = vpop.f32.mrb[0].mxu0
    %v745 = vadd.f32 0.0, %v744
    %v746 = vpop.f32.mrb[0].mxu0
    %747 = vmatprep.mubr.f32.mxu0 0.0
    %748 = vmatmul.mubr.f32.gmra.mrb[0].mxu0 %v31
    %v749 = vpop.f32.mrb[0].mxu0
    %v750 = vadd.f32 0.0, %v749
    %v751 = vpop.f32.mrb[0].mxu0
    %752 = vmatprep.mubr.f32.mxu0 0.0
    %753 = vmatmul.mubr.f32.gmra.mrb[0].mxu0 %v32
    %v754 = vpop.f32.mrb[0].mxu0
    %v755 = vadd.f32 0.0, %v754
    %v756 = vpop.f32.mrb[0].mxu0
    %757 = vdwg.mxu0
    %v758 = vmax.f32 %v735, 0.0
    %v759 = vmax.f32 %v740, 0.0
    %v760 = vmax.f32 %v745, 0.0
    %v761 = vmax.f32 %v750, 0.0
    %v762 = vmax.f32 %v755, 0.0
    %vm763 = vcmask 326656
    %v765 = vsel %vm763, %v33, 0
    %767 = vmatprep.subr.mxu0 0.0
    %768 = vmatpush1.msra.mxu0 %v758
    %769 = vmatprep.subr.mxu0 0.0
    %770 = vmatpush1.msra.mxu0 %v759
    %771 = vmatprep.subr.mxu0 0.0
    %772 = vmatpush1.msra.mxu0 %v760
    %773 = vmatprep.subr.mxu0 0.0
    %774 = vmatpush1.msra.mxu0 %v761
    %775 = vmatprep.subr.mxu0 0.0
    %776 = vmatpush1.msra.mxu0 %v762
    %777 = vmatprep.subr.mxu0 0.0
    %778 = vmatpush1.msra.mxu0 0.0
    %779 = vmatprep.subr.mxu0 0.0
    %780 = vmatpush1.msra.mxu0 0.0
    %781 = vmatprep.subr.mxu0 0.0
    %782 = vmatpush1.msra.mxu0 0.0
    %783 = vmatprep.subr.mxu0 0.0
    %784 = vmatpush1.msra.mxu0 0.0
    %785 = vmatprep.subr.mxu0 0.0
    %786 = vmatpush1.msra.mxu0 0.0
    %787 = vmatprep.subr.mxu0 0.0
    %788 = vmatpush1.msra.mxu0 0.0
    %789 = vmatprep.subr.mxu0 0.0
    %790 = vmatpush1.msra.mxu0 0.0
    %791 = vmatprep.subr.mxu0 0.0
    %792 = vmatpush1.msra.mxu0 0.0
    %793 = vmatprep.subr.mxu0 0.0
    %794 = vmatpush1.msra.mxu0 0.0
    %795 = vmatprep.subr.mxu0 0.0
    %796 = vmatpush1.msra.mxu0 0.0
    %797 = vmatprep.subr.mxu0 0.0
    %798 = vmatpush1.msra.mxu0 0.0
    %799 = vmatprep.subr.mxu0 0.0
    %800 = vmatpush1.msra.mxu0 0.0
    %801 = vmatprep.subr.mxu0 0.0
    %802 = vmatpush1.msra.mxu0 0.0
    %803 = vmatprep.subr.mxu0 0.0
    %804 = vmatpush1.msra.mxu0 0.0
    %805 = vmatprep.subr.mxu0 0.0
    %806 = vmatpush1.msra.mxu0 0.0
    %807 = vmatprep.subr.mxu0 0.0
    %808 = vmatpush1.msra.mxu0 0.0
    %809 = vmatprep.subr.mxu0 0.0
    %810 = vmatpush1.msra.mxu0 0.0
    %811 = vmatprep.subr.mxu0 0.0
    %812 = vmatpush1.msra.mxu0 0.0
    %813 = vmatprep.subr.mxu0 0.0
    %814 = vmatpush1.msra.mxu0 0.0
    %815 = vmatprep.subr.mxu0 0.0
    %816 = vmatpush1.msra.mxu0 0.0
    %817 = vmatprep.subr.mxu0 0.0
    %818 = vmatpush1.msra.mxu0 0.0
    %819 = vmatprep.subr.mxu0 0.0
    %820 = vmatpush1.msra.mxu0 0.0
    %821 = vmatprep.subr.mxu0 0.0
    %822 = vmatpush1.msra.mxu0 0.0
    %823 = vmatprep.subr.mxu0 0.0
    %824 = vmatpush1.msra.mxu0 0.0
    %825 = vmatprep.subr.mxu0 0.0
    %826 = vmatpush1.msra.mxu0 0.0
    %827 = vmatprep.subr.mxu0 0.0
    %828 = vmatpush1.msra.mxu0 0.0
    %829 = vmatprep.subr.mxu0 0.0
    %830 = vmatpush1.msra.mxu0 0.0
    %831 = vmatprep.mubr.f32.mxu0 0.0
    %832 = vmatmul.mubr.f32.gmra.mrb[0].mxu0 %v765
    %v833 = vpop.f32.mrb[0].mxu0
    %v834 = vadd.f32 0.0, %v833
    %v835 = vpop.f32.mrb[0].mxu0
    %836 = vdwg.mxu0
    %v837 = vmax.f32 %v834, 0.0
    %838 = vset.pattern.permute.xlu0 64
    %839 = vperm.xlu0 %838, %v33
    %v840 = vpop.permute.xlu0 %839
    %v842 = vmul.f32 %v837, %v840
    %vm843 = vcmask 15360
    %v844 = vsel %vm843, %v842, 0.0
    %v845 = vrot.slane %v844, 4
    %v846 = vadd.f32 %v844, %v845
    %v847 = vrot.slane %v846, 2
    %v848 = vadd.f32 %v846, %v847
    %v849 = vrot.slane %v848, 1
    %v850 = vadd.f32 %v848, %v849
    %v851 = vxor.u32 %v850, 2147483648
    %v852 = vmul.f32 %v851, 1.442695
    %v853 = vpow.pop %v852
    %v854 = vadd.f32 %v853, 1.0
    %v855 = vrcp.pop %v854
    %v856 = vmul.f32 1.0, %v855
    %vm857 = vcmask 8192
    %858 = vst.msk [vmem:[#allocation2] sm:$0x1] %vm857, %v856
    // Predicated region
    $region10: #{seqvit_forward.1} parent=1 // pred_check
      _
    $region11: #{seqvit_forward.1} parent=1 // pred_check_branch
      %860 = sbr.rel (0) target = $region13
    $region12: #{seqvit_forward.1} parent=1 // pred_region
      %s862 = ssub.s32 16, 16
      %863 = vsyncadd [#allocation3], %s862
      %s865 = sshll.u32 [#allocation2], 4
      %s866 = int_to_ptr.vmem [resolvable:$true] %s865
      %868 = dma.vmem_to_hbm [thread:$0]  %s866, 16, %s2, [#allocation3]
    $region13: #{seqvit_forward.1} parent=1 // pred_fallthru
      _
    // Predicated region
    $region14: #{seqvit_forward.1} parent=1 // pred_check
      _
    $region15: #{seqvit_forward.1} parent=1 // pred_check_branch
      %870 = sbr.rel (0) target = $region17
    $region16: #{seqvit_forward.1} parent=1 // pred_region
      %871 = dma.done [#allocation3], 16
    $region17: #{seqvit_forward.1} parent=1 // pred_fallthru
      _
    %872 = vsyncpa [#allocation3], 1

</llo_original>
